<compile_context>
chip_gen: v5e
topology: v5e:2x2
jax: 0.10.0
libtpu: 0.0.40
codegen_flags: <defaults>
</compile_context>

<pallas_src>
import jax
import jax.numpy as jnp
from jax.experimental import pallas as pl
from jax.experimental.pallas import tpu as pltpu

NEG_SLOPE = 0.01  # torch.nn.LeakyReLU default
HIDDEN = 64       # per-head hidden width; fused hidden = 128 (one full lane tile)


def _leaky_relu(x):
    return jnp.where(x > 0, x, NEG_SLOPE * x)


def _round_up(x, m):
    return ((x + m - 1) // m) * m


def _cdiv(a, b):
    return (a + b - 1) // b


def _choose_bm(B, block_rows):
    """Pick the batch tile: minimize padding (<8 rows/tile) and, when the batch is big
    enough, keep >= 2 parallel tiles so v7x's two TensorCores both get work."""
    B = max(int(B), 1)
    block_rows = max(int(block_rows), 8)
    if B >= 16:
        block_rows = min(block_rows, _round_up(_cdiv(B, 2), 8))
    n_tiles = _cdiv(B, block_rows)
    return _round_up(_cdiv(B, n_tiles), 8)


# ----------------------------------------------------------------------------- kernels


def icm_fused_kernel(obs_ref, next_ref, act_ref,
                     w1o_ref, w1n_ref, w1a_ref, b1_ref,
                     w2_ref, b2_ref, out_ref):
    """Training path: both heads in one fused pipeline.

    Hidden h is [bm, 128] (f32 accumulator): lanes [0:64] = inverse-model hidden,
    lanes [64:128] = forward-model hidden.  Layer 2 is one block-diagonal matmul
    producing the lane-dense slab [pred_action | pred_next_obs | 0-pad].
    """
    h = jnp.dot(obs_ref[...], w1o_ref[...], preferred_element_type=jnp.float32)
    h = h + jnp.dot(next_ref[...], w1n_ref[...], preferred_element_type=jnp.float32)
    h = h + jnp.dot(act_ref[...], w1a_ref[...], preferred_element_type=jnp.float32)
    h = _leaky_relu(h + b1_ref[...])
    out = jnp.dot(h.astype(w2_ref.dtype), w2_ref[...],
                  preferred_element_type=jnp.float32) + b2_ref[...]
    out_ref[...] = out.astype(out_ref.dtype)


def forward_only_kernel(obs_ref, act_ref,
                        w1o_ref, w1a_ref, b1_ref,
                        w2_ref, b2_ref, out_ref):
    """Inference path (training=False): forward model only, lane-dense padded output."""
    h = jnp.dot(obs_ref[...], w1o_ref[...], preferred_element_type=jnp.float32)
    h = h + jnp.dot(act_ref[...], w1a_ref[...], preferred_element_type=jnp.float32)
    h = _leaky_relu(h + b1_ref[...])
    out = jnp.dot(h.astype(w2_ref.dtype), w2_ref[...],
                  preferred_element_type=jnp.float32) + b2_ref[...]
    out_ref[...] = out.astype(out_ref.dtype)


# ------------------------------------------------------------------------ param helpers


def init_params(key, latent_dim, action_dim, dtype=jnp.float32):
    """Deterministic synthetic params. Weights stored as [in, out] (already W.T)."""
    ks = jax.random.split(key, 8)

    def lin(kw, kb, fan_in, fan_out):
        bound = 1.0 / jnp.sqrt(fan_in)
        w = jax.random.uniform(kw, (fan_in, fan_out), dtype, -bound, bound)
        b = jax.random.uniform(kb, (1, fan_out), dtype, -bound, bound)
        return w, b

    w1i, b1i = lin(ks[0], ks[1], 2 * latent_dim, HIDDEN)
    w2i, b2i = lin(ks[2], ks[3], HIDDEN, action_dim)
    w1f, b1f = lin(ks[4], ks[5], latent_dim + action_dim, HIDDEN)
    w2f, b2f = lin(ks[6], ks[7], HIDDEN, latent_dim)
    return dict(w1i=w1i, b1i=b1i, w2i=w2i, b2i=b2i,
                w1f=w1f, b1f=b1f, w2f=w2f, b2f=b2f)


def pack_params(params, latent_dim, action_dim, compute_dtype=jnp.bfloat16):
    """One-time fusion of the two heads' weights into kernel-friendly operands.

    Layer 1 is split along the contraction axis per input tensor (obs / next_obs / action)
    so no activation concatenation is ever needed.  Layer 2 is block-diagonal and padded
    lane-dense to a multiple of 128 columns.  Weights are stored in `compute_dtype`
    (default bf16: halves streamed bytes, native MXU path); biases stay f32 since they are
    added to the f32 accumulator.
    """
    L, A = latent_dim, action_dim
    cdt = jnp.dtype(compute_dtype)
    fdt = jnp.float32

    w1i = params["w1i"].astype(cdt)   # [2L, 64]
    w2i = params["w2i"].astype(cdt)   # [64, A]
    w1f = params["w1f"].astype(cdt)   # [L+A, 64]
    w2f = params["w2f"].astype(cdt)   # [64, L]
    b1i = params["b1i"].astype(fdt)   # [1, 64]
    b2i = params["b2i"].astype(fdt)   # [1, A]
    b1f = params["b1f"].astype(fdt)   # [1, 64]
    b2f = params["b2f"].astype(fdt)   # [1, L]
    H2 = 2 * HIDDEN  # 128

    # --- training path (fused heads) ---
    w1_obs = jnp.concatenate([w1i[:L], w1f[:L]], axis=1)                        # [L, 128]
    w1_next = jnp.concatenate([w1i[L:], jnp.zeros((L, HIDDEN), cdt)], axis=1)   # [L, 128]
    w1_act = jnp.concatenate([jnp.zeros((A, HIDDEN), cdt), w1f[L:]], axis=1)    # [A, 128]
    b1 = jnp.concatenate([b1i, b1f], axis=1)                                    # [1, 128]

    out_pad = _round_up(A + L, 128)
    w2 = jnp.zeros((H2, out_pad), cdt)
    w2 = w2.at[:HIDDEN, :A].set(w2i)
    w2 = w2.at[HIDDEN:, A:A + L].set(w2f)
    b2 = jnp.zeros((1, out_pad), fdt)
    b2 = b2.at[:, :A].set(b2i)
    b2 = b2.at[:, A:A + L].set(b2f)

    # --- inference path (forward model only), lane-dense padded output ---
    f_out_pad = _round_up(L, 128)
    f_w2 = jnp.zeros((HIDDEN, f_out_pad), cdt).at[:, :L].set(w2f)
    f_b2 = jnp.zeros((1, f_out_pad), fdt).at[:, :L].set(b2f)

    return dict(
        w1_obs=w1_obs, w1_next=w1_next, w1_act=w1_act, b1=b1, w2=w2, b2=b2,
        f_w1_obs=w1f[:L], f_w1_act=w1f[L:], f_b1=b1f, f_w2=f_w2, f_b2=f_b2,
    )


# ----------------------------------------------------------------------------- wrapper


def inverse_forward_dynamics(obs, action, next_obs, packed, training=True,
                             block_rows=2048):
    """Pallas-backed equivalent of InverseForwardDynamicsModel.forward.

    Streamed activations are cast to the packed weights' dtype (default bf16); outputs
    are stored in that dtype.  For best perf keep the returned slices inside the same jit
    as the loss so XLA fuses them into consumers.
    """
    B, L = obs.shape
    A = action.shape[-1]
    cdt = packed["w1_obs"].dtype          # streamed compute/storage dtype (bf16 or f32)
    isz = jnp.dtype(cdt).itemsize

    bm = _choose_bm(B, block_rows)
    Bp = _round_up(B, bm)
    grid = (Bp // bm,)

    def prep(x):
        x = x.astype(cdt)
        if Bp != B:
            x = jnp.pad(x, ((0, Bp - B), (0, 0)))
        return x

    def act_spec(feat):  # streamed activation tiles
        return pl.BlockSpec((bm, feat), lambda i: (i, 0))

    def const_spec(shape):  # VMEM-resident weights/biases
        return pl.BlockSpec(shape, lambda i: (0, 0))

    if training:
        w1o, w1n, w1a = packed["w1_obs"], packed["w1_next"], packed["w1_act"]
        b1, w2, b2 = packed["b1"], packed["w2"], packed["b2"]
        weights = (w1o, w1n, w1a, b1, w2, b2)
        in_lanes = 2 * L + A
    else:
        w1o, w1a = packed["f_w1_obs"], packed["f_w1_act"]
        b1, w2, b2 = packed["f_b1"], packed["f_w2"], packed["f_b2"]
        weights = (w1o, w1a, b1, w2, b2)
        in_lanes = L + A
    out_pad = w2.shape[-1]
    hid = w2.shape[0]

    # Advisory cost estimate (this is a small mem-bound custom call; let XLA overlap it).
    weight_bytes = sum(int(w.size) * w.dtype.itemsize for w in weights)
    flops = 2 * Bp * (in_lanes * hid + hid * out_pad)
    bytes_accessed = Bp * (in_lanes + out_pad) * isz + weight_bytes
    cost = pl.CostEstimate(flops=int(flops), transcendentals=0,
                           bytes_accessed=int(bytes_accessed))

    # Explicit VMEM limit: >= 32 MiB (covers v5e's 16 MiB default) and grows with tile
    # size, capped below v7x's 64 MiB physical VMEM.
    tile_bytes = bm * (in_lanes + out_pad) * isz
    vmem_limit = min(56 << 20,
                     max(32 << 20, 4 * tile_bytes + 4 * weight_bytes + (8 << 20)))
    cparams = pltpu.CompilerParams(dimension_semantics=("parallel",),
                                   vmem_limit_bytes=int(vmem_limit))

    if training:
        out = pl.pallas_call(
            icm_fused_kernel,
            out_shape=jax.ShapeDtypeStruct((Bp, out_pad), cdt),
            grid=grid,
            in_specs=[act_spec(L), act_spec(L), act_spec(A),
                      const_spec(w1o.shape), const_spec(w1n.shape),
                      const_spec(w1a.shape), const_spec(b1.shape),
                      const_spec(w2.shape), const_spec(b2.shape)],
            out_specs=pl.BlockSpec((bm, out_pad), lambda i: (i, 0)),
            compiler_params=cparams,
            cost_estimate=cost,
        )(prep(obs), prep(next_obs), prep(action), w1o, w1n, w1a, b1, w2, b2)
        out = out[:B]
        pred_action = out[:, :A]
        pred_next_obs = out[:, A:A + L]
        return pred_action, pred_next_obs

    # training=False: forward model only (no inverse-head compute or output traffic).
    out = pl.pallas_call(
        forward_only_kernel,
        out_shape=jax.ShapeDtypeStruct((Bp, out_pad), cdt),
        grid=grid,
        in_specs=[act_spec(L), act_spec(A),
                  const_spec(w1o.shape), const_spec(w1a.shape),
                  const_spec(b1.shape), const_spec(w2.shape), const_spec(b2.shape)],
        out_specs=pl.BlockSpec((bm, out_pad), lambda i: (i, 0)),
        compiler_params=cparams,
        cost_estimate=cost,
    )(prep(obs), prep(action), w1o, w1a, b1, w2, b2)
    return out[:B, :L]


# --------------------------------------------------------------------------- reference


def _reference(obs, action, next_obs, params, quantize_dtype=None):
    """Pure-JAX reference (unfused, mirrors the PyTorch module).

    If quantize_dtype is given, inputs/weights are quantized to that dtype (then promoted
    back to f32) so the bf16 streaming path can be checked tightly.
    """
    def q(x):
        if quantize_dtype is None:
            return x
        return x.astype(quantize_dtype).astype(jnp.float32)

    obs, action, next_obs = q(obs), q(action), q(next_obs)
    w1i, w2i = q(params["w1i"]), q(params["w2i"])
    w1f, w2f = q(params["w1f"]), q(params["w2f"])
    b1i, b2i = params["b1i"], params["b2i"]
    b1f, b2f = params["b1f"], params["b2f"]

    im_in = jnp.concatenate([obs, next_obs], axis=1)
    fm_in = jnp.concatenate([obs, action], axis=-1)
    h_i = _leaky_relu(im_in @ w1i + b1i)
    pred_action = h_i @ w2i + b2i
    h_f = _leaky_relu(fm_in @ w1f + b1f)
    pred_next_obs = h_f @ w2f + b2f
    return pred_action, pred_next_obs


if __name__ == "__main__":
    B, LATENT_DIM, ACTION_DIM = 8, 32, 8

    key = jax.random.PRNGKey(0)
    k_obs, k_act, k_next, k_params = jax.random.split(key, 4)
    obs = jax.random.normal(k_obs, (B, LATENT_DIM), jnp.float32)
    action = jax.random.normal(k_act, (B, ACTION_DIM), jnp.float32)
    next_obs = jax.random.normal(k_next, (B, LATENT_DIM), jnp.float32)

    params = init_params(k_params, LATENT_DIM, ACTION_DIM)
    packed_f32 = pack_params(params, LATENT_DIM, ACTION_DIM, compute_dtype=jnp.float32)
    packed_bf16 = pack_params(params, LATENT_DIM, ACTION_DIM, compute_dtype=jnp.bfloat16)

    # --- f32-packed path: tight numerical check of the fused-kernel structure ---
    pred_action, pred_next_obs = jax.block_until_ready(
        inverse_forward_dynamics(obs, action, next_obs, packed_f32, training=True))
    ref_action, ref_next_obs = _reference(obs, action, next_obs, params)
    assert pred_action.shape == (B, ACTION_DIM)
    assert pred_next_obs.shape == (B, LATENT_DIM)
    assert jnp.allclose(pred_action, ref_action, atol=1e-5, rtol=1e-5)
    assert jnp.allclose(pred_next_obs, ref_next_obs, atol=1e-5, rtol=1e-5)

    # --- bf16 streaming path (default perf config), checked vs bf16-quantized reference ---
    pa_b, pn_b = jax.block_until_ready(
        inverse_forward_dynamics(obs, action, next_obs, packed_bf16, training=True))
    qra, qrn = _reference(obs, action, next_obs, params, quantize_dtype=jnp.bfloat16)
    assert jnp.allclose(pa_b.astype(jnp.float32), qra, atol=3e-2, rtol=3e-2)
    assert jnp.allclose(pn_b.astype(jnp.float32), qrn, atol=3e-2, rtol=3e-2)

    # --- training=False path (forward-model-only kernel, bf16) ---
    only_next = jax.block_until_ready(
        inverse_forward_dynamics(obs, action, next_obs, packed_bf16, training=False))
    assert only_next.shape == (B, LATENT_DIM)
    assert jnp.allclose(only_next.astype(jnp.float32), qrn, atol=3e-2, rtol=3e-2)

    # --- multi-step batch grid with padding (B=20, 8-row tiles -> grid=(3,)) ---
    B2 = 20
    k2o, k2a, k2n = jax.random.split(jax.random.PRNGKey(1), 3)
    obs2 = jax.random.normal(k2o, (B2, LATENT_DIM), jnp.float32)
    act2 = jax.random.normal(k2a, (B2, ACTION_DIM), jnp.float32)
    nxt2 = jax.random.normal(k2n, (B2, LATENT_DIM), jnp.float32)
    pa2, pn2 = jax.block_until_ready(
        inverse_forward_dynamics(obs2, act2, nxt2, packed_f32, training=True, block_rows=8))
    ra2, rn2 = _reference(obs2, act2, nxt2, params)
    assert jnp.allclose(pa2, ra2, atol=1e-5, rtol=1e-5)
    assert jnp.allclose(pn2, rn2, atol=1e-5, rtol=1e-5)

    # TODO(synk): self.softmax is defined in the PyTorch module but never used in forward();
    # intentionally not implemented.

    print("KERNEL_OK")
</pallas_src>

<mosaic_0001>
module attributes {stable_mosaic.version = 11 : i64} {
  func.func @icm_fused_kernel(%arg0: i32, %arg1: memref<8x32xf32, #tpu.memory_space<vmem>>, %arg2: memref<8x32xf32, #tpu.memory_space<vmem>>, %arg3: memref<8x8xf32, #tpu.memory_space<vmem>>, %arg4: memref<32x128xf32, #tpu.memory_space<vmem>>, %arg5: memref<32x128xf32, #tpu.memory_space<vmem>>, %arg6: memref<8x128xf32, #tpu.memory_space<vmem>>, %arg7: memref<1x128xf32, #tpu.memory_space<vmem>>, %arg8: memref<128x128xf32, #tpu.memory_space<vmem>>, %arg9: memref<1x128xf32, #tpu.memory_space<vmem>>, %arg10: memref<8x128xf32, #tpu.memory_space<vmem>>) attributes {dimension_semantics = [#tpu.dimension_semantics<parallel>], iteration_bounds = array<i64: 1>, scalar_prefetch = 0 : i64, scratch_operands = 0 : i64, tpu.core_type = #tpu.core_type<tc>, window_params = [{transform_indices = @transform_0, window_bounds = array<i64: 8, 32>}, {transform_indices = @transform_1, window_bounds = array<i64: 8, 32>}, {transform_indices = @transform_2, window_bounds = array<i64: 8, 8>}, {pipeline_mode = #tpu.pipeline_mode<synchronous>, transform_indices = @transform_3, window_bounds = array<i64: 32, 128>}, {pipeline_mode = #tpu.pipeline_mode<synchronous>, transform_indices = @transform_4, window_bounds = array<i64: 32, 128>}, {pipeline_mode = #tpu.pipeline_mode<synchronous>, transform_indices = @transform_5, window_bounds = array<i64: 8, 128>}, {pipeline_mode = #tpu.pipeline_mode<synchronous>, transform_indices = @transform_6, window_bounds = array<i64: 1, 128>}, {pipeline_mode = #tpu.pipeline_mode<synchronous>, transform_indices = @transform_7, window_bounds = array<i64: 128, 128>}, {pipeline_mode = #tpu.pipeline_mode<synchronous>, transform_indices = @transform_8, window_bounds = array<i64: 1, 128>}, {transform_indices = @transform_9, window_bounds = array<i64: 8, 128>}]} {
    %c0 = arith.constant 0 : index
    %c0_0 = arith.constant 0 : index
    %0 = vector.load %arg1[%c0, %c0_0] : memref<8x32xf32, #tpu.memory_space<vmem>>, vector<8x32xf32>
    %c0_1 = arith.constant 0 : index
    %c0_2 = arith.constant 0 : index
    %1 = vector.load %arg4[%c0_1, %c0_2] : memref<32x128xf32, #tpu.memory_space<vmem>>, vector<32x128xf32>
    %cst = arith.constant dense<0.000000e+00> : vector<8x128xf32>
    %2 = tpu.matmul %0, %1, %cst {dimension_numbers = #tpu.dot_dimension_numbers<[1], [0], [0], [1], [0, 0, 1, 1], [], []>} : vector<8x32xf32>, vector<32x128xf32>, vector<8x128xf32> -> vector<8x128xf32>
    %c0_3 = arith.constant 0 : index
    %c0_4 = arith.constant 0 : index
    %3 = vector.load %arg2[%c0_3, %c0_4] : memref<8x32xf32, #tpu.memory_space<vmem>>, vector<8x32xf32>
    %c0_5 = arith.constant 0 : index
    %c0_6 = arith.constant 0 : index
    %4 = vector.load %arg5[%c0_5, %c0_6] : memref<32x128xf32, #tpu.memory_space<vmem>>, vector<32x128xf32>
    %cst_7 = arith.constant dense<0.000000e+00> : vector<8x128xf32>
    %5 = tpu.matmul %3, %4, %cst_7 {dimension_numbers = #tpu.dot_dimension_numbers<[1], [0], [0], [1], [0, 0, 1, 1], [], []>} : vector<8x32xf32>, vector<32x128xf32>, vector<8x128xf32> -> vector<8x128xf32>
    %6 = arith.addf %2, %5 : vector<8x128xf32>
    %c0_8 = arith.constant 0 : index
    %c0_9 = arith.constant 0 : index
    %7 = vector.load %arg3[%c0_8, %c0_9] : memref<8x8xf32, #tpu.memory_space<vmem>>, vector<8x8xf32>
    %c0_10 = arith.constant 0 : index
    %c0_11 = arith.constant 0 : index
    %8 = vector.load %arg6[%c0_10, %c0_11] : memref<8x128xf32, #tpu.memory_space<vmem>>, vector<8x128xf32>
    %cst_12 = arith.constant dense<0.000000e+00> : vector<8x128xf32>
    %9 = tpu.matmul %7, %8, %cst_12 {dimension_numbers = #tpu.dot_dimension_numbers<[1], [0], [0], [1], [0, 0, 1, 1], [], []>} : vector<8x8xf32>, vector<8x128xf32>, vector<8x128xf32> -> vector<8x128xf32>
    %10 = arith.addf %6, %9 : vector<8x128xf32>
    %c0_13 = arith.constant 0 : index
    %c0_14 = arith.constant 0 : index
    %11 = vector.load %arg7[%c0_13, %c0_14] : memref<1x128xf32, #tpu.memory_space<vmem>>, vector<1x128xf32>
    %12 = vector.broadcast %11 : vector<1x128xf32> to vector<8x128xf32>
    %13 = arith.addf %10, %12 : vector<8x128xf32>
    %cst_15 = arith.constant 0.000000e+00 : f32
    %14 = vector.broadcast %cst_15 : f32 to vector<8x128xf32>
    %15 = arith.cmpf ogt, %13, %14 : vector<8x128xf32>
    %cst_16 = arith.constant 0.00999999977 : f32
    %16 = vector.broadcast %cst_16 : f32 to vector<8x128xf32>
    %17 = arith.mulf %16, %13 : vector<8x128xf32>
    %18 = arith.select %15, %13, %17 : vector<8x128xi1>, vector<8x128xf32>
    %c0_17 = arith.constant 0 : index
    %c0_18 = arith.constant 0 : index
    %19 = vector.load %arg8[%c0_17, %c0_18] : memref<128x128xf32, #tpu.memory_space<vmem>>, vector<128x128xf32>
    %cst_19 = arith.constant dense<0.000000e+00> : vector<8x128xf32>
    %20 = tpu.matmul %18, %19, %cst_19 {dimension_numbers = #tpu.dot_dimension_numbers<[1], [0], [0], [1], [0, 0, 1, 1], [], []>} : vector<8x128xf32>, vector<128x128xf32>, vector<8x128xf32> -> vector<8x128xf32>
    %c0_20 = arith.constant 0 : index
    %c0_21 = arith.constant 0 : index
    %21 = vector.load %arg9[%c0_20, %c0_21] : memref<1x128xf32, #tpu.memory_space<vmem>>, vector<1x128xf32>
    %22 = vector.broadcast %21 : vector<1x128xf32> to vector<8x128xf32>
    %23 = arith.addf %20, %22 : vector<8x128xf32>
    %c0_22 = arith.constant 0 : index
    %c0_23 = arith.constant 0 : index
    %24 = vector.load %arg10[%c0_22, %c0_23] : memref<8x128xf32, #tpu.memory_space<vmem>>, vector<8x128xf32>
    tpu.vector_store %arg10[%c0_22, %c0_23], %23 {strides = array<i32>} : memref<8x128xf32, #tpu.memory_space<vmem>>, vector<8x128xf32>,
    return
  }
  func.func @transform_0(%arg0: i32) -> (i32, i32) {
    %c0_i32 = arith.constant 0 : i32
    %c0_i32_0 = arith.constant 0 : i32
    return %arg0, %c0_i32 : i32, i32
  }
  func.func @transform_1(%arg0: i32) -> (i32, i32) {
    %c0_i32 = arith.constant 0 : i32
    %c0_i32_0 = arith.constant 0 : i32
    return %arg0, %c0_i32 : i32, i32
  }
  func.func @transform_2(%arg0: i32) -> (i32, i32) {
    %c0_i32 = arith.constant 0 : i32
    %c0_i32_0 = arith.constant 0 : i32
    return %arg0, %c0_i32 : i32, i32
  }
  func.func @transform_3(%arg0: i32) -> (i32, i32) {
    %c0_i32 = arith.constant 0 : i32
    %c0_i32_0 = arith.constant 0 : i32
    %c0_i32_1 = arith.constant 0 : i32
    return %c0_i32, %c0_i32_0 : i32, i32
  }
  func.func @transform_4(%arg0: i32) -> (i32, i32) {
    %c0_i32 = arith.constant 0 : i32
    %c0_i32_0 = arith.constant 0 : i32
    %c0_i32_1 = arith.constant 0 : i32
    return %c0_i32, %c0_i32_0 : i32, i32
  }
  func.func @transform_5(%arg0: i32) -> (i32, i32) {
    %c0_i32 = arith.constant 0 : i32
    %c0_i32_0 = arith.constant 0 : i32
    %c0_i32_1 = arith.constant 0 : i32
    return %c0_i32, %c0_i32_0 : i32, i32
  }
  func.func @transform_6(%arg0: i32) -> (i32, i32) {
    %c0_i32 = arith.constant 0 : i32
    %c0_i32_0 = arith.constant 0 : i32
    %c0_i32_1 = arith.constant 0 : i32
    return %c0_i32, %c0_i32_0 : i32, i32
  }
  func.func @transform_7(%arg0: i32) -> (i32, i32) {
    %c0_i32 = arith.constant 0 : i32
    %c0_i32_0 = arith.constant 0 : i32
    %c0_i32_1 = arith.constant 0 : i32
    return %c0_i32, %c0_i32_0 : i32, i32
  }
  func.func @transform_8(%arg0: i32) -> (i32, i32) {
    %c0_i32 = arith.constant 0 : i32
    %c0_i32_0 = arith.constant 0 : i32
    %c0_i32_1 = arith.constant 0 : i32
    return %c0_i32, %c0_i32_0 : i32, i32
  }
  func.func @transform_9(%arg0: i32) -> (i32, i32) {
    %c0_i32 = arith.constant 0 : i32
    %c0_i32_0 = arith.constant 0 : i32
    return %arg0, %c0_i32 : i32, i32
  }
}

</mosaic_0001>

<llo_original>
// kernel: tpu_custom_call.1
$region0: #{tpu_custom_call.1}
  #allocation0 [shape = 'u32[]', space=smem, size = 0x4, offset = 0x4, fixed_abs, tag = 'smem constant byte address 0x4 - core index']
  #allocation1 [shape = 'u32[72,128]{1,0:T(1,128)}', space=vmem, size = 0x9000, scoped, tag = 'internal scratch']
  %s0 = inlined_call_operand.hbm [shape: f32[8,32], index: 0, kind: input, shape index: {}]
  %s1 = inlined_call_operand.hbm [shape: f32[8,32], index: 1, kind: input, shape index: {}]
  %s2 = inlined_call_operand.hbm [shape: f32[8,8], index: 2, kind: input, shape index: {}]
  %s3 = inlined_call_operand.hbm [shape: f32[32,128], index: 3, kind: input, shape index: {}]
  %s4 = inlined_call_operand.hbm [shape: f32[32,128], index: 4, kind: input, shape index: {}]
  %s5 = inlined_call_operand.hbm [shape: f32[8,128], index: 5, kind: input, shape index: {}]
  %s6 = inlined_call_operand.vmem [shape: f32[1,128], index: 6, kind: input, shape index: {}]
  %s7 = inlined_call_operand.hbm [shape: f32[128,128], index: 7, kind: input, shape index: {}]
  %s8 = inlined_call_operand.vmem [shape: f32[1,128], index: 8, kind: input, shape index: {}]
  %s9 = inlined_call_operand.hbm [shape: f32[8,128], index: 9, kind: output, shape index: {}]
  %s10 = sld [smem:[#allocation0]]
  $region74: #{tpu_custom_call.1} parent=0
    _
  %s12 = ssub.s32 1, %s10
  %s13 = scalar_select 0, %s12, %s10
  $region1: #{tpu_custom_call.1} parent=0
    #allocation2 [shape = 'u8[4096]{0}', space=vmem, size = 0x1000, scoped, tag = 'input window, operand 0, single buffered']
    #allocation3 [shape = 's32[1]{0}', space=sflag, size = 0x4, scoped, tag = 'scoped memory for tpu_custom_call.1']
    #allocation4 [shape = 's32[1]{0}', space=sflag, size = 0x4, scoped, tag = 'scoped memory for tpu_custom_call.1']
    #allocation5 [shape = 'u8[4096]{0}', space=vmem, size = 0x1000, scoped, tag = 'input window, operand 1, single buffered']
    #allocation6 [shape = 's32[1]{0}', space=sflag, size = 0x4, scoped, tag = 'scoped memory for tpu_custom_call.1']
    #allocation7 [shape = 'u8[4096]{0}', space=vmem, size = 0x1000, scoped, tag = 'input window, operand 2, single buffered']
    #allocation8 [shape = 'u8[16384]{0}', space=vmem, size = 0x4000, scoped, tag = 'input window, operand 3, single buffered']
    #allocation9 [shape = 's32[1]{0}', space=sflag, size = 0x4, scoped, tag = 'scoped memory for tpu_custom_call.1']
    #allocation10 [shape = 'u8[16384]{0}', space=vmem, size = 0x4000, scoped, tag = 'input window, operand 4, single buffered']
    #allocation11 [shape = 'u8[4096]{0}', space=vmem, size = 0x1000, scoped, tag = 'input window, operand 5, single buffered']
    #allocation12 [shape = 's32[1]{0}', space=sflag, size = 0x4, scoped, tag = 'scoped memory for tpu_custom_call.1']
    #allocation13 [shape = 'u8[65536]{0}', space=vmem, size = 0x10000, scoped, tag = 'input window, operand 7, single buffered']
    #allocation14 [shape = 'u8[4096]{0}', space=vmem, size = 0x1000, scoped, tag = 'output window, operand 0, single buffered']
    %14 = vsyncpa [#allocation3], 0
    %15 = vsyncpa [#allocation6], 0
    %16 = vsyncpa [#allocation9], 0
    %17 = vsyncpa [#allocation12], 0
    %18 = vsyncpa [#allocation4], 0
    // Predicated region
    $region2: #{tpu_custom_call.1} parent=1 // pred_check
      _
    $region3: #{tpu_custom_call.1} parent=1 // pred_check_branch
      %20 = sbr.rel (0) target = $region5
    $region4: #{tpu_custom_call.1} parent=1 // pred_region
      %22 = vsyncadd [#allocation3], 0
      %s24 = sshll.u32 %s0, 4
      %s25 = int_to_ptr.hbm [resolvable:$true] %s24
      %s26 = sshll.u32 [#allocation2], 4
      %s27 = int_to_ptr.vmem [resolvable:$true] %s26
      %29 = dma.hbm_to_vmem [thread:$0]  %s25, 128, %s27, [#allocation3]
    $region5: #{tpu_custom_call.1} parent=1 // pred_fallthru
      _
    // Predicated region
    $region6: #{tpu_custom_call.1} parent=1 // pred_check
      _
    $region7: #{tpu_custom_call.1} parent=1 // pred_check_branch
      %31 = sbr.rel (0) target = $region9
    $region8: #{tpu_custom_call.1} parent=1 // pred_region
      %33 = vsyncadd [#allocation6], 0
      %s35 = sshll.u32 %s1, 4
      %s36 = int_to_ptr.hbm [resolvable:$true] %s35
      %s37 = sshll.u32 [#allocation5], 4
      %s38 = int_to_ptr.vmem [resolvable:$true] %s37
      %40 = dma.hbm_to_vmem [thread:$0]  %s36, 128, %s38, [#allocation6]
    $region9: #{tpu_custom_call.1} parent=1 // pred_fallthru
      _
    // Predicated region
    $region10: #{tpu_custom_call.1} parent=1 // pred_check
      _
    $region11: #{tpu_custom_call.1} parent=1 // pred_check_branch
      %42 = sbr.rel (0) target = $region13
    $region12: #{tpu_custom_call.1} parent=1 // pred_region
      %44 = vsyncadd [#allocation6], 0
      %s46 = sshll.u32 %s2, 4
      %s47 = int_to_ptr.hbm [resolvable:$true] %s46
      %s48 = sshll.u32 [#allocation7], 4
      %s49 = int_to_ptr.vmem [resolvable:$true] %s48
      %51 = dma.hbm_to_vmem [thread:$0]  %s47, 128, %s49, [#allocation6]
    $region13: #{tpu_custom_call.1} parent=1 // pred_fallthru
      _
    // Predicated region
    $region14: #{tpu_custom_call.1} parent=1 // pred_check
      _
    $region15: #{tpu_custom_call.1} parent=1 // pred_check_branch
      %53 = sbr.rel (0) target = $region17
    $region16: #{tpu_custom_call.1} parent=1 // pred_region
      %55 = vsyncadd [#allocation9], 0
      %s56 = sshll.u32 %s3, 4
      %s57 = int_to_ptr.hbm [resolvable:$true] %s56
      %s58 = sshll.u32 [#allocation8], 4
      %s59 = int_to_ptr.vmem [resolvable:$true] %s58
      %64 = dma.hbm_to_vmem [thread:$0]  %s57, 512, %s59, [#allocation9], 128, 128, 8
    $region17: #{tpu_custom_call.1} parent=1 // pred_fallthru
      _
    // Predicated region
    $region18: #{tpu_custom_call.1} parent=1 // pred_check
      _
    $region19: #{tpu_custom_call.1} parent=1 // pred_check_branch
      %66 = sbr.rel (0) target = $region21
    $region20: #{tpu_custom_call.1} parent=1 // pred_region
      %68 = vsyncadd [#allocation9], 0
      %s69 = sshll.u32 %s4, 4
      %s70 = int_to_ptr.hbm [resolvable:$true] %s69
      %s71 = sshll.u32 [#allocation10], 4
      %s72 = int_to_ptr.vmem [resolvable:$true] %s71
      %77 = dma.hbm_to_vmem [thread:$0]  %s70, 512, %s72, [#allocation9], 128, 128, 8
    $region21: #{tpu_custom_call.1} parent=1 // pred_fallthru
      _
    // Predicated region
    $region22: #{tpu_custom_call.1} parent=1 // pred_check
      _
    $region23: #{tpu_custom_call.1} parent=1 // pred_check_branch
      %79 = sbr.rel (0) target = $region25
    $region24: #{tpu_custom_call.1} parent=1 // pred_region
      %81 = vsyncadd [#allocation12], 0
      %s83 = sshll.u32 %s5, 4
      %s84 = int_to_ptr.hbm [resolvable:$true] %s83
      %s85 = sshll.u32 [#allocation11], 4
      %s86 = int_to_ptr.vmem [resolvable:$true] %s85
      %88 = dma.hbm_to_vmem [thread:$0]  %s84, 128, %s86, [#allocation12]
    $region25: #{tpu_custom_call.1} parent=1 // pred_fallthru
      _
    // Predicated region
    $region26: #{tpu_custom_call.1} parent=1 // pred_check
      _
    $region27: #{tpu_custom_call.1} parent=1 // pred_check_branch
      %90 = sbr.rel (0) target = $region29
    $region28: #{tpu_custom_call.1} parent=1 // pred_region
      _
    $region29: #{tpu_custom_call.1} parent=1 // pred_fallthru
      _
    // Predicated region
    $region30: #{tpu_custom_call.1} parent=1 // pred_check
      _
    $region31: #{tpu_custom_call.1} parent=1 // pred_check_branch
      %92 = sbr.rel (0) target = $region33
    $region32: #{tpu_custom_call.1} parent=1 // pred_region
      %94 = vsyncadd [#allocation12], 0
      %s95 = sshll.u32 %s7, 4
      %s96 = int_to_ptr.hbm [resolvable:$true] %s95
      %s97 = sshll.u32 [#allocation13], 4
      %s98 = int_to_ptr.vmem [resolvable:$true] %s97
      %103 = dma.hbm_to_vmem [thread:$0]  %s96, 2048, %s98, [#allocation12], 128, 128, 8
    $region33: #{tpu_custom_call.1} parent=1 // pred_fallthru
      _
    // Predicated region
    $region34: #{tpu_custom_call.1} parent=1 // pred_check
      _
    $region35: #{tpu_custom_call.1} parent=1 // pred_check_branch
      %105 = sbr.rel (0) target = $region37
    $region36: #{tpu_custom_call.1} parent=1 // pred_region
      _
    $region37: #{tpu_custom_call.1} parent=1 // pred_fallthru
      _
    // Predicated region
    $region38: #{tpu_custom_call.1} parent=1 // pred_check
      _
    $region39: #{tpu_custom_call.1} parent=1 // pred_check_branch
      %107 = sbr.rel (0) target = $region41
    $region40: #{tpu_custom_call.1} parent=1 // pred_region
      %109 = dma.done [#allocation3], 128
    $region41: #{tpu_custom_call.1} parent=1 // pred_fallthru
      _
    // Predicated region
    $region42: #{tpu_custom_call.1} parent=1 // pred_check
      _
    $region43: #{tpu_custom_call.1} parent=1 // pred_check_branch
      %111 = sbr.rel (0) target = $region45
    $region44: #{tpu_custom_call.1} parent=1 // pred_region
      %113 = dma.done [#allocation6], 128
    $region45: #{tpu_custom_call.1} parent=1 // pred_fallthru
      _
    // Predicated region
    $region46: #{tpu_custom_call.1} parent=1 // pred_check
      _
    $region47: #{tpu_custom_call.1} parent=1 // pred_check_branch
      %115 = sbr.rel (0) target = $region49
    $region48: #{tpu_custom_call.1} parent=1 // pred_region
      %117 = dma.done [#allocation6], 128
    $region49: #{tpu_custom_call.1} parent=1 // pred_fallthru
      _
    // Predicated region
    $region50: #{tpu_custom_call.1} parent=1 // pred_check
      _
    $region51: #{tpu_custom_call.1} parent=1 // pred_check_branch
      %119 = sbr.rel (0) target = $region53
    $region52: #{tpu_custom_call.1} parent=1 // pred_region
      %121 = dma.done [#allocation9], 512
    $region53: #{tpu_custom_call.1} parent=1 // pred_fallthru
      _
    // Predicated region
    $region54: #{tpu_custom_call.1} parent=1 // pred_check
      _
    $region55: #{tpu_custom_call.1} parent=1 // pred_check_branch
      %123 = sbr.rel (0) target = $region57
    $region56: #{tpu_custom_call.1} parent=1 // pred_region
      %125 = dma.done [#allocation9], 512
    $region57: #{tpu_custom_call.1} parent=1 // pred_fallthru
      _
    // Predicated region
    $region58: #{tpu_custom_call.1} parent=1 // pred_check
      _
    $region59: #{tpu_custom_call.1} parent=1 // pred_check_branch
      %127 = sbr.rel (0) target = $region61
    $region60: #{tpu_custom_call.1} parent=1 // pred_region
      %129 = dma.done [#allocation12], 128
    $region61: #{tpu_custom_call.1} parent=1 // pred_fallthru
      _
    // Predicated region
    $region62: #{tpu_custom_call.1} parent=1 // pred_check
      _
    $region63: #{tpu_custom_call.1} parent=1 // pred_check_branch
      %131 = sbr.rel (0) target = $region65
    $region64: #{tpu_custom_call.1} parent=1 // pred_region
      %133 = dma.done [#allocation12], 2048
    $region65: #{tpu_custom_call.1} parent=1 // pred_fallthru
      _
    %v134 = vld [vmem:[#allocation2] sm:$0xff]
    %v135 = vld [vmem:[#allocation8] sm:$0xff]
    %v136 = vld [vmem:[#allocation8 + $0x8] sm:$0xff]
    %v137 = vld [vmem:[#allocation8 + $0x10] sm:$0xff]
    %v138 = vld [vmem:[#allocation8 + $0x18] sm:$0xff]
    %v139 = vld [vmem:[#allocation5] sm:$0xff]
    %v140 = vld [vmem:[#allocation10] sm:$0xff]
    %v141 = vld [vmem:[#allocation10 + $0x8] sm:$0xff]
    %v142 = vld [vmem:[#allocation10 + $0x10] sm:$0xff]
    %v143 = vld [vmem:[#allocation10 + $0x18] sm:$0xff]
    %vm144 = vcmask 261120
    %v146 = vsel %vm144, %v139, 0
    %148 = vmatpush.msra.mxu0 0.0
    %149 = vmatpush.msra.mxu0 0.0
    %150 = vmatpush.msra.mxu0 0.0
    %151 = vmatpush.msra.mxu0 0.0
    %152 = vmatpush.msra.mxu0 0.0
    %153 = vmatpush.msra.mxu0 0.0
    %154 = vmatpush.msra.mxu0 0.0
    %155 = vmatpush.msra.mxu0 0.0
    %156 = vmatpush.msra.mxu0 0.0
    %157 = vmatpush.msra.mxu0 0.0
    %158 = vmatpush.msra.mxu0 0.0
    %159 = vmatpush.msra.mxu0 0.0
    %160 = vmatpush.msra.mxu0 %v143
    %161 = vmatpush.msra.mxu0 %v142
    %162 = vmatpush.msra.mxu0 %v141
    %163 = vmatpush.msra.mxu0 %v140
    %164 = vmatmul.f32.gmra.mxu0 %v146
    %v165 = vpop.f32.mrf.mxu0
    %v166 = vadd.f32 0.0, %v165
    %167 = vdwg.mxu0
    %v169 = vsel %vm144, %v134, 0
    %171 = vmatpush.msra.mxu0 0.0
    %172 = vmatpush.msra.mxu0 0.0
    %173 = vmatpush.msra.mxu0 0.0
    %174 = vmatpush.msra.mxu0 0.0
    %175 = vmatpush.msra.mxu0 0.0
    %176 = vmatpush.msra.mxu0 0.0
    %177 = vmatpush.msra.mxu0 0.0
    %178 = vmatpush.msra.mxu0 0.0
    %179 = vmatpush.msra.mxu0 0.0
    %180 = vmatpush.msra.mxu0 0.0
    %181 = vmatpush.msra.mxu0 0.0
    %182 = vmatpush.msra.mxu0 0.0
    %183 = vmatpush.msra.mxu0 %v138
    %184 = vmatpush.msra.mxu0 %v137
    %185 = vmatpush.msra.mxu0 %v136
    %186 = vmatpush.msra.mxu0 %v135
    %187 = vmatmul.f32.gmra.mxu0 %v169
    %v188 = vpop.f32.mrf.mxu0
    %v189 = vadd.f32 %v166, %v188
    %190 = vdwg.mxu0
    %v191 = vld [vmem:[#allocation7] sm:$0xff]
    %v192 = vld [vmem:[#allocation11] sm:$0xff]
    %vm193 = vcmask 64512
    %v195 = vsel %vm193, %v191, 0
    %197 = vmatpush.msra.mxu0 0.0
    %198 = vmatpush.msra.mxu0 0.0
    %199 = vmatpush.msra.mxu0 0.0
    %200 = vmatpush.msra.mxu0 0.0
    %201 = vmatpush.msra.mxu0 0.0
    %202 = vmatpush.msra.mxu0 0.0
    %203 = vmatpush.msra.mxu0 0.0
    %204 = vmatpush.msra.mxu0 0.0
    %205 = vmatpush.msra.mxu0 0.0
    %206 = vmatpush.msra.mxu0 0.0
    %207 = vmatpush.msra.mxu0 0.0
    %208 = vmatpush.msra.mxu0 0.0
    %209 = vmatpush.msra.mxu0 0.0
    %210 = vmatpush.msra.mxu0 0.0
    %211 = vmatpush.msra.mxu0 0.0
    %212 = vmatpush.msra.mxu0 %v192
    %213 = vmatmul.f32.gmra.mxu0 %v195
    %v214 = vpop.f32.mrf.mxu0
    %v215 = vadd.f32 0.0, %v214
    %216 = vdwg.mxu0
    %v217 = vadd.f32 %v189, %v215
    %v218 = vld [vmem:[%s6] sm:$0x1]
    %v220 = vperm.slane %v218, 0
    %v222 = vadd.f32 %v217, %v220
    %vm223 = vcmp.gt.f32.partialorder %v222, 0.0
    %v224 = vmul.f32 %v222, 0.01
    %v225 = vsel %vm223, %v222, %v224
    %v226 = vld [vmem:[#allocation13] sm:$0xff]
    %v227 = vld [vmem:[#allocation13 + $0x8] sm:$0xff]
    %v228 = vld [vmem:[#allocation13 + $0x10] sm:$0xff]
    %v229 = vld [vmem:[#allocation13 + $0x18] sm:$0xff]
    %v230 = vld [vmem:[#allocation13 + $0x20] sm:$0xff]
    %v231 = vld [vmem:[#allocation13 + $0x28] sm:$0xff]
    %v232 = vld [vmem:[#allocation13 + $0x30] sm:$0xff]
    %v233 = vld [vmem:[#allocation13 + $0x38] sm:$0xff]
    %v234 = vld [vmem:[#allocation13 + $0x40] sm:$0xff]
    %v235 = vld [vmem:[#allocation13 + $0x48] sm:$0xff]
    %v236 = vld [vmem:[#allocation13 + $0x50] sm:$0xff]
    %v237 = vld [vmem:[#allocation13 + $0x58] sm:$0xff]
    %v238 = vld [vmem:[#allocation13 + $0x60] sm:$0xff]
    %v239 = vld [vmem:[#allocation13 + $0x68] sm:$0xff]
    %v240 = vld [vmem:[#allocation13 + $0x70] sm:$0xff]
    %v241 = vld [vmem:[#allocation13 + $0x78] sm:$0xff]
    %v242 = vld [vmem:[%s8] sm:$0x1]
    %v244 = vperm.slane %v242, 0
    %246 = vmatpush.msra.mxu0 %v241
    %247 = vmatpush.msra.mxu0 %v240
    %248 = vmatpush.msra.mxu0 %v239
    %249 = vmatpush.msra.mxu0 %v238
    %250 = vmatpush.msra.mxu0 %v237
    %251 = vmatpush.msra.mxu0 %v236
    %252 = vmatpush.msra.mxu0 %v235
    %253 = vmatpush.msra.mxu0 %v234
    %254 = vmatpush.msra.mxu0 %v233
    %255 = vmatpush.msra.mxu0 %v232
    %256 = vmatpush.msra.mxu0 %v231
    %257 = vmatpush.msra.mxu0 %v230
    %258 = vmatpush.msra.mxu0 %v229
    %259 = vmatpush.msra.mxu0 %v228
    %260 = vmatpush.msra.mxu0 %v227
    %261 = vmatpush.msra.mxu0 %v226
    %262 = vmatmul.f32.gmra.mxu0 %v225
    %v263 = vpop.f32.mrf.mxu0
    %v264 = vadd.f32 %v244, %v263
    %265 = vdwg.mxu0
    %266 = vst [vmem:[#allocation14] sm:$0xff] %v264
    // Predicated region
    $region66: #{tpu_custom_call.1} parent=1 // pred_check
      _
    $region67: #{tpu_custom_call.1} parent=1 // pred_check_branch
      %268 = sbr.rel (0) target = $region69
    $region68: #{tpu_custom_call.1} parent=1 // pred_region
      %270 = vsyncadd [#allocation4], 0
      %s272 = sshll.u32 [#allocation14], 4
      %s273 = int_to_ptr.vmem [resolvable:$true] %s272
      %s274 = sshll.u32 %s9, 4
      %s275 = int_to_ptr.hbm [resolvable:$true] %s274
      %277 = dma.vmem_to_hbm [thread:$0]  %s273, 128, %s275, [#allocation4]
    $region69: #{tpu_custom_call.1} parent=1 // pred_fallthru
      _
    // Predicated region
    $region70: #{tpu_custom_call.1} parent=1 // pred_check
      _
    $region71: #{tpu_custom_call.1} parent=1 // pred_check_branch
      %279 = sbr.rel (0) target = $region73
    $region72: #{tpu_custom_call.1} parent=1 // pred_region
      %281 = dma.done [#allocation4], 128
    $region73: #{tpu_custom_call.1} parent=1 // pred_fallthru
      _
    %282 = vsyncpa [#allocation3], 1
    %283 = vsyncpa [#allocation6], 1
    %284 = vsyncpa [#allocation9], 1
    %285 = vsyncpa [#allocation12], 1
    %286 = vsyncpa [#allocation4], 1

</llo_original>
